<compile_context>
chip_gen: v5e
topology: v5e:2x2
jax: 0.10.0
libtpu: 0.0.40
codegen_flags: <defaults>
</compile_context>

<pallas_src>
import jax
import jax.numpy as jnp
from jax.experimental import pallas as pl
from jax.experimental.pallas import tpu as pltpu

INPUT_DIM = 256
N_CLASS = 10

TARGET_TILE_B = 4096          # rows per grid step (multiple of 8); mem-bound sweet spot
VMEM_CLAMP_BYTES = 48 * 1024 * 1024  # safe on v7x (64 MiB/TC), trivially fine on v5e/v6e


def data_classifier_kernel(x_ref, w_ref, b_ref, o_ref):
    # Single fully-connected layer: y = x @ W + b  (no activation in the reference module).
    y = jnp.dot(x_ref[...], w_ref[...], preferred_element_type=jnp.float32)
    o_ref[...] = (y + b_ref[...]).astype(o_ref.dtype)


def _select_tile_b(B):
    """Fixed-size batch tile: multiple of 8, <= TARGET_TILE_B, and <= ceil(B/2) (rounded up
    to 8) so the grid has >= 2 steps whenever B > 8 (v7x megacore sharding)."""
    if B <= 8:
        return B  # full-dim block is always legal
    half = -(-B // 2)                 # ceil(B / 2)
    half8 = ((half + 7) // 8) * 8     # round up to multiple of 8
    return max(8, min(TARGET_TILE_B, half8))


def data_classifier(x, params, *, tile_b=None):
    """x: [B, ...] with prod(...) == INPUT_DIM (flattened inside). Returns [B, N_CLASS] f32."""
    B = x.shape[0]
    x_flat = x.reshape(B, -1)  # keep native dtype: no wrapper-side f32 cast pass
    D = x_flat.shape[1]
    assert D == INPUT_DIM, f"expected flattened feature dim {INPUT_DIM}, got {D}"

    # Integer / bool inputs: cast once (floats, incl. bf16/f16, go straight to the MXU).
    if not jnp.issubdtype(x_flat.dtype, jnp.floating):
        x_flat = x_flat.astype(jnp.float32)

    w = params["w"].astype(jnp.float32)   # (D, N_CLASS)
    b = params["b"].astype(jnp.float32)   # (1, N_CLASS)
    # For low-precision float inputs, feed the MXU a matching low-precision W (f32 accumulate
    # via preferred_element_type). The weight is tiny (256x10), so this wrapper cast is free.
    if jnp.dtype(x_flat.dtype).itemsize < 4:
        w = w.astype(x_flat.dtype)

    if tile_b is None:
        tile_b = _select_tile_b(B)
    grid = (pl.cdiv(B, tile_b),)

    # Explicit VMEM budget: double-buffered x and out tiles + weights/bias + headroom.
    x_bytes = jnp.dtype(x_flat.dtype).itemsize
    w_bytes = jnp.dtype(w.dtype).itemsize
    vmem_bytes = (2 * tile_b * D * x_bytes            # x tiles (double buffered)
                  + 2 * tile_b * N_CLASS * 4          # out tiles (double buffered)
                  + 2 * (D * N_CLASS * w_bytes + N_CLASS * 4)  # W + b (double buffered)
                  + (4 << 20))                        # headroom
    vmem_bytes = min(max(vmem_bytes, 8 << 20), VMEM_CLAMP_BYTES)

    out = pl.pallas_call(
        data_classifier_kernel,
        out_shape=jax.ShapeDtypeStruct((B, N_CLASS), jnp.float32),
        grid_spec=pltpu.PrefetchScalarGridSpec(
            num_scalar_prefetch=0,
            grid=grid,
            in_specs=[
                pl.BlockSpec((tile_b, D), lambda i: (i, 0)),        # x tile
                pl.BlockSpec((D, N_CLASS), lambda i: (0, 0)),       # W (grid-invariant)
                pl.BlockSpec((1, N_CLASS), lambda i: (0, 0)),       # b (grid-invariant)
            ],
            out_specs=pl.BlockSpec((tile_b, N_CLASS), lambda i: (i, 0)),
        ),
        compiler_params=pltpu.CompilerParams(
            dimension_semantics=("parallel",),
            vmem_limit_bytes=vmem_bytes,
        ),
    )(x_flat, w, b)

    return out


def init_params(key, input_dim=INPUT_DIM, n_class=N_CLASS):
    """Mimics nn.Linear's uniform(-1/sqrt(fan_in), 1/sqrt(fan_in)) init.
    Weight is stored already transposed to (in, out)."""
    kw, kb = jax.random.split(key)
    bound = 1.0 / jnp.sqrt(input_dim)
    w = jax.random.uniform(kw, (input_dim, n_class), jnp.float32, -bound, bound)
    b = jax.random.uniform(kb, (1, n_class), jnp.float32, -bound, bound)
    return {"w": w, "b": b}


def reference_forward(x, p):
    B = x.shape[0]
    x_flat = x.reshape(B, -1).astype(jnp.float32)
    return x_flat @ p["w"] + p["b"]


if __name__ == "__main__":
    key = jax.random.PRNGKey(0)
    kx, kp = jax.random.split(key)

    # Small shape consistent with the module: batch=16, (4, 8, 8) flattens to 256 features.
    B = 16
    x = jax.random.normal(kx, (B, 4, 8, 8), jnp.float32)
    params = init_params(kp)

    out = data_classifier(x, params)
    out = jax.block_until_ready(out)

    ref = reference_forward(x, params)
    assert out.shape == (B, N_CLASS)
    assert jnp.allclose(out, ref, atol=1e-5, rtol=1e-5), "mismatch vs JAX reference"

    print("KERNEL_OK")
</pallas_src>

<mosaic_0001>
module attributes {stable_mosaic.version = 11 : i64} {
  func.func @data_classifier_kernel(%arg0: i32, %arg1: memref<8x256xf32, #tpu.memory_space<vmem>>, %arg2: memref<256x10xf32, #tpu.memory_space<vmem>>, %arg3: memref<1x10xf32, #tpu.memory_space<vmem>>, %arg4: memref<8x10xf32, #tpu.memory_space<vmem>>) attributes {dimension_semantics = [#tpu.dimension_semantics<parallel>], iteration_bounds = array<i64: 2>, scalar_prefetch = 0 : i64, scratch_operands = 0 : i64, tpu.core_type = #tpu.core_type<tc>, window_params = [{transform_indices = @transform_0, window_bounds = array<i64: 8, 256>}, {pipeline_mode = #tpu.pipeline_mode<synchronous>, transform_indices = @transform_1, window_bounds = array<i64: 256, 10>}, {pipeline_mode = #tpu.pipeline_mode<synchronous>, transform_indices = @transform_2, window_bounds = array<i64: 1, 10>}, {transform_indices = @transform_3, window_bounds = array<i64: 8, 10>}]} {
    %c0 = arith.constant 0 : index
    %c0_0 = arith.constant 0 : index
    %0 = vector.load %arg1[%c0, %c0_0] : memref<8x256xf32, #tpu.memory_space<vmem>>, vector<8x256xf32>
    %c0_1 = arith.constant 0 : index
    %c0_2 = arith.constant 0 : index
    %1 = vector.load %arg2[%c0_1, %c0_2] : memref<256x10xf32, #tpu.memory_space<vmem>>, vector<256x10xf32>
    %cst = arith.constant dense<0.000000e+00> : vector<8x10xf32>
    %2 = tpu.matmul %0, %1, %cst {dimension_numbers = #tpu.dot_dimension_numbers<[1], [0], [0], [1], [0, 0, 1, 1], [], []>} : vector<8x256xf32>, vector<256x10xf32>, vector<8x10xf32> -> vector<8x10xf32>
    %c0_3 = arith.constant 0 : index
    %c0_4 = arith.constant 0 : index
    %3 = vector.load %arg3[%c0_3, %c0_4] : memref<1x10xf32, #tpu.memory_space<vmem>>, vector<1x10xf32>
    %4 = vector.broadcast %3 : vector<1x10xf32> to vector<8x10xf32>
    %5 = arith.addf %2, %4 : vector<8x10xf32>
    %c0_5 = arith.constant 0 : index
    %c0_6 = arith.constant 0 : index
    %6 = vector.load %arg4[%c0_5, %c0_6] : memref<8x10xf32, #tpu.memory_space<vmem>>, vector<8x10xf32>
    tpu.vector_store %arg4[%c0_5, %c0_6], %5 {strides = array<i32>} : memref<8x10xf32, #tpu.memory_space<vmem>>, vector<8x10xf32>,
    return
  }
  func.func @transform_0(%arg0: i32) -> (i32, i32) {
    %c0_i32 = arith.constant 0 : i32
    %c0_i32_0 = arith.constant 0 : i32
    return %arg0, %c0_i32 : i32, i32
  }
  func.func @transform_1(%arg0: i32) -> (i32, i32) {
    %c0_i32 = arith.constant 0 : i32
    %c0_i32_0 = arith.constant 0 : i32
    %c0_i32_1 = arith.constant 0 : i32
    return %c0_i32, %c0_i32_0 : i32, i32
  }
  func.func @transform_2(%arg0: i32) -> (i32, i32) {
    %c0_i32 = arith.constant 0 : i32
    %c0_i32_0 = arith.constant 0 : i32
    %c0_i32_1 = arith.constant 0 : i32
    return %c0_i32, %c0_i32_0 : i32, i32
  }
  func.func @transform_3(%arg0: i32) -> (i32, i32) {
    %c0_i32 = arith.constant 0 : i32
    %c0_i32_0 = arith.constant 0 : i32
    return %arg0, %c0_i32 : i32, i32
  }
}

</mosaic_0001>

<llo_original>
// kernel: tpu_custom_call.1
$region0: #{tpu_custom_call.1}
  #allocation0 [shape = 'u32[]', space=smem, size = 0x4, offset = 0x4, fixed_abs, tag = 'smem constant byte address 0x4 - core index']
  #allocation1 [shape = 'u32[72,128]{1,0:T(1,128)}', space=vmem, size = 0x9000, scoped, tag = 'internal scratch']
  %s0 = inlined_call_operand.vmem [shape: f32[16,256], index: 0, kind: input, shape index: {}]
  %s1 = inlined_call_operand.vmem [shape: f32[256,10], index: 1, kind: input, shape index: {}]
  %s2 = inlined_call_operand.vmem [shape: f32[1,10], index: 2, kind: input, shape index: {}]
  %s3 = inlined_call_operand.hbm [shape: f32[16,10], index: 3, kind: output, shape index: {}]
  %s4 = sld [smem:[#allocation0]]
  $region45: #{tpu_custom_call.1} parent=0
    _
  %s6 = ssub.s32 1, %s4
  %s7 = scalar_select 0, %s6, %s4
  $region1: #{tpu_custom_call.1} parent=0
    #allocation2 [shape = 'u8[8192]{0}', space=vmem, size = 0x2000, scoped, tag = 'output window, operand 0']
    #allocation3 [shape = 's32[2]{0}', space=sflag, size = 0x8, scoped, tag = 'scoped memory for tpu_custom_call.1']
    %8 = vsyncpa [#allocation3], 0
    %s9 = scalar_lea.sflag [#allocation3], 1
    %10 = vsyncpa %s9, 0
    loop: start=0, step=1, limit=4
    $region2: #{tpu_custom_call.1} parent=1 // loop_pre_header
      _
    $region3: #{tpu_custom_call.1} parent=1 // loop_header
      %s12 = sphi 0, %s16
      %p13 = scmp.ge.s32.totalorder %s12, 4
      %s22 = sphi 0, %s24
      %s25 = sphi 0, %s22
      %s26 = sphi 0, %s25
      %s42 = sphi 0, %s26
      %s46 = sphi 0, %s46
      %s48 = sphi 0, %s46
      %s49 = sphi 0, %s48
      %s63 = sphi 0, %s49
      %s67 = sphi 0, %s67
      %s69 = sphi 0, %s67
      %s70 = sphi 0, %s69
      %s84 = sphi 0, %s70
      %s90 = sphi 0, %s92
      %s93 = sphi 0, %s90
      %s94 = sphi 0, %s93
      %s110 = sphi 0, %s94
    $region4: #{tpu_custom_call.1} parent=1 // loop_header_branch
      %15 = sbr.rel (%p13) target = $region8
    $region5: #{tpu_custom_call.1} parent=1 // loop_body
      %s17 = ssub.s32 %s12, 1
      %s18 = ssub.s32 %s12, 2
      %s19 = sadd.s32 %s12, 1
      %s20 = ssub.s32 %s12, %s19
      %p21 = scmp.eq.s32.totalorder %s20, 0
      %s23 = sadd.s32 %s22, 1
      %s24 = scalar_select %p21, %s22, %s23
      %p27 = pneg %p21
      %p28 = scmp.eq.s32.totalorder %s12, 1
      %p29 = por %p27, %p28
      %p30 = scmp.ne.s32.totalorder %s22, %s25
      %p31 = scmp.eq.s32.totalorder %s12, 0
      %p32 = por %p30, %p31
      %p33 = scmp.ne.s32.totalorder %s22, %s25
      %p34 = scmp.eq.s32.totalorder %s17, 1
      %p35 = por %p33, %p34
      %p36 = scmp.ne.s32.totalorder %s25, %s26
      %p37 = scmp.eq.s32.totalorder %s17, 0
      %p38 = por %p36, %p37
      %p39 = scmp.ne.s32.totalorder %s25, %s26
      %p40 = scmp.eq.s32.totalorder %s18, 1
      %p41 = por %p39, %p40
      %p43 = scmp.ne.s32.totalorder %s26, %s42
      %p44 = scmp.eq.s32.totalorder %s18, 0
      %p45 = por %p43, %p44
      %s47 = sadd.s32 %s46, 1
      %p50 = scmp.eq.s32.totalorder %s12, 1
      %p51 = scmp.ne.s32.totalorder %s46, %s48
      %p52 = scmp.eq.s32.totalorder %s12, 0
      %p53 = por %p51, %p52
      %p54 = scmp.ne.s32.totalorder %s46, %s48
      %p55 = scmp.eq.s32.totalorder %s17, 1
      %p56 = por %p54, %p55
      %p57 = scmp.ne.s32.totalorder %s48, %s49
      %p58 = scmp.eq.s32.totalorder %s17, 0
      %p59 = por %p57, %p58
      %p60 = scmp.ne.s32.totalorder %s48, %s49
      %p61 = scmp.eq.s32.totalorder %s18, 1
      %p62 = por %p60, %p61
      %p64 = scmp.ne.s32.totalorder %s49, %s63
      %p65 = scmp.eq.s32.totalorder %s18, 0
      %p66 = por %p64, %p65
      %s68 = sadd.s32 %s67, 1
      %p71 = scmp.eq.s32.totalorder %s12, 1
      %p72 = scmp.ne.s32.totalorder %s67, %s69
      %p73 = scmp.eq.s32.totalorder %s12, 0
      %p74 = por %p72, %p73
      %p75 = scmp.ne.s32.totalorder %s67, %s69
      %p76 = scmp.eq.s32.totalorder %s17, 1
      %p77 = por %p75, %p76
      %p78 = scmp.ne.s32.totalorder %s69, %s70
      %p79 = scmp.eq.s32.totalorder %s17, 0
      %p80 = por %p78, %p79
      %p81 = scmp.ne.s32.totalorder %s69, %s70
      %p82 = scmp.eq.s32.totalorder %s18, 1
      %p83 = por %p81, %p82
      %p85 = scmp.ne.s32.totalorder %s70, %s84
      %p86 = scmp.eq.s32.totalorder %s18, 0
      %p87 = por %p85, %p86
      %s88 = ssub.s32 %s12, %s19
      %p89 = scmp.eq.s32.totalorder %s88, 0
      %s91 = sadd.s32 %s90, 1
      %s92 = scalar_select %p89, %s90, %s91
      %p95 = pneg %p89
      %p96 = scmp.eq.s32.totalorder %s12, 1
      %p97 = por %p95, %p96
      %p98 = scmp.ne.s32.totalorder %s90, %s93
      %p99 = scmp.eq.s32.totalorder %s12, 0
      %p100 = por %p98, %p99
      %p101 = scmp.ne.s32.totalorder %s90, %s93
      %p102 = scmp.eq.s32.totalorder %s17, 1
      %p103 = por %p101, %p102
      %p104 = scmp.ne.s32.totalorder %s93, %s94
      %p105 = scmp.eq.s32.totalorder %s17, 0
      %p106 = por %p104, %p105
      %p107 = scmp.ne.s32.totalorder %s93, %s94
      %p108 = scmp.eq.s32.totalorder %s18, 1
      %p109 = por %p107, %p108
      %p111 = scmp.ne.s32.totalorder %s94, %s110
      %p112 = scmp.eq.s32.totalorder %s18, 0
      %p113 = por %p111, %p112
      %p114 = scmp.le.s32.totalorder 1, %s12
      %p115 = scmp.lt.s32.totalorder %s12, 3
      %p116 = pnand %p114, %p115
      %p117 = pneg %p116
      // Predicated region
      $region9: #{tpu_custom_call.1} parent=5 // pred_check
        _
      $region10: #{tpu_custom_call.1} parent=5 // pred_check_branch
        %119 = sbr.rel (%p116) target = $region12
      $region11: #{tpu_custom_call.1} parent=5 // pred_region
        %s120 = ssub.s32 %s12, 1
        // Predicated region
        $region13: #{tpu_custom_call.1} parent=11 // pred_check
          %p121 = pneg %p59
        $region14: #{tpu_custom_call.1} parent=11 // pred_check_branch
          %123 = sbr.rel (%p121) target = $region16
        $region15: #{tpu_custom_call.1} parent=11 // pred_region
          _
        $region16: #{tpu_custom_call.1} parent=11 // pred_fallthru
          _
        // Predicated region
        $region17: #{tpu_custom_call.1} parent=11 // pred_check
          %p124 = pneg %p80
        $region18: #{tpu_custom_call.1} parent=11 // pred_check_branch
          %126 = sbr.rel (%p124) target = $region20
        $region19: #{tpu_custom_call.1} parent=11 // pred_region
          _
        $region20: #{tpu_custom_call.1} parent=11 // pred_fallthru
          _
      $region12: #{tpu_custom_call.1} parent=5 // pred_fallthru
        _
      %p127 = scmp.lt.s32.totalorder %s12, 2
      // Predicated region
      $region21: #{tpu_custom_call.1} parent=5 // pred_check
        %p128 = pneg %p127
      $region22: #{tpu_custom_call.1} parent=5 // pred_check_branch
        %130 = sbr.rel (%p128) target = $region24
      $region23: #{tpu_custom_call.1} parent=5 // pred_region
        // Predicated region
        $region25: #{tpu_custom_call.1} parent=23 // pred_check
          %p131 = pneg %p32
        $region26: #{tpu_custom_call.1} parent=23 // pred_check_branch
          %133 = sbr.rel (%p131) target = $region28
        $region27: #{tpu_custom_call.1} parent=23 // pred_region
          %p134 = scmp.lt.s32.totalorder %s12, 1
          %s135 = scalar_select %p134, %s12, 1
          %s136 = smul.addr %s135, 2
          %s137 = smul.addr %s136, 8
          %s138 = scalar_lea.vmem %s0, %s137
        $region28: #{tpu_custom_call.1} parent=23 // pred_fallthru
          _
      $region24: #{tpu_custom_call.1} parent=5 // pred_fallthru
        _
      %p139 = scmp.le.s32.totalorder 1, %s12
      %p140 = scmp.lt.s32.totalorder %s12, 3
      %p141 = pnand %p139, %p140
      %p142 = pneg %p141
      // Predicated region
      $region29: #{tpu_custom_call.1} parent=5 // pred_check
        _
      $region30: #{tpu_custom_call.1} parent=5 // pred_check_branch
        %144 = sbr.rel (%p141) target = $region32
      $region31: #{tpu_custom_call.1} parent=5 // pred_region
        %s145 = ssub.s32 %s12, 1
        %p146 = scmp.lt.s32.totalorder %s17, 1
        %s147 = scalar_select %p146, %s17, 1
        %s148 = smul.addr %s147, 2
        %s149 = smul.addr %s148, 8
        %s150 = scalar_lea.vmem %s0, %s149
        %p151 = pneg %p38
        %p152 = pneg %p35
        %p153 = pneg %p59
        %p154 = pneg %p56
        %p155 = pneg %p80
        %p156 = pneg %p77
        %p157 = pneg %p106
        %p158 = pneg %p103
        %s159 = sand.u32 %s93, 1
        %s160 = scalar_lea.sflag [#allocation3], %s159
        %s161 = sand.u32 %s93, 1
        %s162 = smul.addr %s161, 8
        %s163 = scalar_lea.vmem [#allocation2], %s162
        %p164 = scmp.lt.s32.totalorder %s17, 1
        %s165 = scalar_select %p164, %s17, 1
        %s166 = smul.addr %s165, 2
        %s167 = smul.addr %s166, 8
        %s168 = scalar_lea.vmem %s0, %s167
        %v169 = vld [vmem:[%s168] sm:$0xff]
        %v170 = vld [vmem:[%s168 + $0x8] sm:$0xff]
        %v171 = vld [vmem:[%s1] sm:$0xff]
        %v172 = vld [vmem:[%s1 + $0x8] sm:$0xff]
        %v173 = vld [vmem:[%s1 + $0x10] sm:$0xff]
        %v174 = vld [vmem:[%s1 + $0x18] sm:$0xff]
        %v175 = vld [vmem:[%s1 + $0x20] sm:$0xff]
        %v176 = vld [vmem:[%s1 + $0x28] sm:$0xff]
        %v177 = vld [vmem:[%s1 + $0x30] sm:$0xff]
        %v178 = vld [vmem:[%s1 + $0x38] sm:$0xff]
        %v179 = vld [vmem:[%s1 + $0x40] sm:$0xff]
        %v180 = vld [vmem:[%s1 + $0x48] sm:$0xff]
        %v181 = vld [vmem:[%s1 + $0x50] sm:$0xff]
        %v182 = vld [vmem:[%s1 + $0x58] sm:$0xff]
        %v183 = vld [vmem:[%s1 + $0x60] sm:$0xff]
        %v184 = vld [vmem:[%s1 + $0x68] sm:$0xff]
        %v185 = vld [vmem:[%s1 + $0x70] sm:$0xff]
        %v186 = vld [vmem:[%s1 + $0x78] sm:$0xff]
        %v187 = vld [vmem:[%s1 + $0x80] sm:$0xff]
        %v188 = vld [vmem:[%s1 + $0x88] sm:$0xff]
        %v189 = vld [vmem:[%s1 + $0x90] sm:$0xff]
        %v190 = vld [vmem:[%s1 + $0x98] sm:$0xff]
        %v191 = vld [vmem:[%s1 + $0xa0] sm:$0xff]
        %v192 = vld [vmem:[%s1 + $0xa8] sm:$0xff]
        %v193 = vld [vmem:[%s1 + $0xb0] sm:$0xff]
        %v194 = vld [vmem:[%s1 + $0xb8] sm:$0xff]
        %v195 = vld [vmem:[%s1 + $0xc0] sm:$0xff]
        %v196 = vld [vmem:[%s1 + $0xc8] sm:$0xff]
        %v197 = vld [vmem:[%s1 + $0xd0] sm:$0xff]
        %v198 = vld [vmem:[%s1 + $0xd8] sm:$0xff]
        %v199 = vld [vmem:[%s1 + $0xe0] sm:$0xff]
        %v200 = vld [vmem:[%s1 + $0xe8] sm:$0xff]
        %v201 = vld [vmem:[%s1 + $0xf0] sm:$0xff]
        %v202 = vld [vmem:[%s1 + $0xf8] sm:$0xff]
        %v203 = vld [vmem:[%s2] sm:$0x1]
        %v205 = vperm.slane %v203, 0
        %207 = vmatpush.msra.mxu0 %v186
        %208 = vmatpush.msra.mxu0 %v185
        %209 = vmatpush.msra.mxu0 %v184
        %210 = vmatpush.msra.mxu0 %v183
        %211 = vmatpush.msra.mxu0 %v182
        %212 = vmatpush.msra.mxu0 %v181
        %213 = vmatpush.msra.mxu0 %v180
        %214 = vmatpush.msra.mxu0 %v179
        %215 = vmatpush.msra.mxu0 %v178
        %216 = vmatpush.msra.mxu0 %v177
        %217 = vmatpush.msra.mxu0 %v176
        %218 = vmatpush.msra.mxu0 %v175
        %219 = vmatpush.msra.mxu0 %v174
        %220 = vmatpush.msra.mxu0 %v173
        %221 = vmatpush.msra.mxu0 %v172
        %222 = vmatpush.msra.mxu0 %v171
        %223 = vmatmul.f32.gmra.mxu0 %v169
        %v224 = vpop.f32.mrf.mxu0
        %v225 = vadd.f32 %v205, %v224
        %226 = vdwg.mxu0
        %227 = vmatpush.msra.mxu0 %v202
        %228 = vmatpush.msra.mxu0 %v201
        %229 = vmatpush.msra.mxu0 %v200
        %230 = vmatpush.msra.mxu0 %v199
        %231 = vmatpush.msra.mxu0 %v198
        %232 = vmatpush.msra.mxu0 %v197
        %233 = vmatpush.msra.mxu0 %v196
        %234 = vmatpush.msra.mxu0 %v195
        %235 = vmatpush.msra.mxu0 %v194
        %236 = vmatpush.msra.mxu0 %v193
        %237 = vmatpush.msra.mxu0 %v192
        %238 = vmatpush.msra.mxu0 %v191
        %239 = vmatpush.msra.mxu0 %v190
        %240 = vmatpush.msra.mxu0 %v189
        %241 = vmatpush.msra.mxu0 %v188
        %242 = vmatpush.msra.mxu0 %v187
        %243 = vmatmul.f32.gmra.mxu0 %v170
        %v244 = vpop.f32.mrf.mxu0
        %v245 = vadd.f32 %v225, %v244
        %246 = vdwg.mxu0
        %vm247 = vcmask 80896
        %248 = vst.msk [vmem:[%s163] sm:$0xff] %vm247, %v245
        %s249 = sand.u32 %s93, 1
        %s250 = scalar_lea.sflag [#allocation3], %s249
        %s251 = sand.u32 %s93, 1
        %s252 = smul.addr %s251, 8
        %s253 = scalar_lea.vmem [#allocation2], %s252
        // Predicated region
        $region33: #{tpu_custom_call.1} parent=31 // pred_check
          %p254 = pneg %p103
        $region34: #{tpu_custom_call.1} parent=31 // pred_check_branch
          %256 = sbr.rel (%p254) target = $region36
        $region35: #{tpu_custom_call.1} parent=31 // pred_region
          %258 = vsyncadd %s250, 0
          %s259 = smul.addr %s17, 8
          %s260 = scalar_lea.hbm %s3, %s259
          %s262 = sshll.u32 %s253, 4
          %s263 = int_to_ptr.vmem [resolvable:$true] %s262
          %s264 = sshll.u32 %s260, 4
          %s265 = int_to_ptr.hbm [resolvable:$true] %s264
          %267 = dma.vmem_to_hbm [thread:$0]  %s263, 128, %s265, %s250
        $region36: #{tpu_custom_call.1} parent=31 // pred_fallthru
          _
      $region32: #{tpu_custom_call.1} parent=5 // pred_fallthru
        _
      %p268 = scmp.le.s32.totalorder 2, %s12
      // Predicated region
      $region37: #{tpu_custom_call.1} parent=5 // pred_check
        %p269 = pneg %p268
      $region38: #{tpu_custom_call.1} parent=5 // pred_check_branch
        %271 = sbr.rel (%p269) target = $region40
      $region39: #{tpu_custom_call.1} parent=5 // pred_region
        %s272 = ssub.s32 %s12, 2
        // Predicated region
        $region41: #{tpu_custom_call.1} parent=39 // pred_check
          %p273 = pneg %p109
        $region42: #{tpu_custom_call.1} parent=39 // pred_check_branch
          %275 = sbr.rel (%p273) target = $region44
        $region43: #{tpu_custom_call.1} parent=39 // pred_region
          %s276 = sand.u32 %s94, 1
          %s277 = scalar_lea.sflag [#allocation3], %s276
          %s278 = sand.u32 %s94, 1
          %s279 = smul.addr %s278, 8
          %s280 = scalar_lea.vmem [#allocation2], %s279
          %282 = dma.done %s277, 128
        $region44: #{tpu_custom_call.1} parent=39 // pred_fallthru
          _
      $region40: #{tpu_custom_call.1} parent=5 // pred_fallthru
        _
    $region6: #{tpu_custom_call.1} parent=1 // loop_footer
      %s16 = sadd.s32 1, %s12
    $region7: #{tpu_custom_call.1} parent=1 // loop_footer_branch
      %11 = sbr.rel target = $region3
    $region8: #{tpu_custom_call.1} parent=1 // loop_exit
      _
    %283 = vsyncpa [#allocation3], 1
    %s284 = scalar_lea.sflag [#allocation3], 1
    %285 = vsyncpa %s284, 1

</llo_original>
